<compile_context>
chip_gen: v5e
topology: v5e:2x2
jax: 0.10.0
libtpu: 0.0.40
codegen_flags: <defaults>
</compile_context>

<pallas_src>
import jax
import jax.numpy as jnp
from jax.experimental import pallas as pl
from jax.experimental.pallas import tpu as pltpu

K = 3        # kernel_size
S = 2        # stride
P = 1        # padding
BN_EPS = 1e-5
LANE = 128
SUBLANE = 8


def _round_up(x, m):
    return (x + m - 1) // m * m


def _blk_bytes(rows, cols, itemsize):
    """Rough VMEM footprint of a 2-D (rows, cols) block with (8,128) tile padding."""
    return (_round_up(max(int(rows), 1), SUBLANE)
            * _round_up(max(int(cols), 1), LANE) * itemsize)


def _vmem_capacity():
    try:
        return int(pltpu.get_tpu_info().vmem_capacity_bytes)
    except Exception:
        return 64 << 20     # conservative: v7x per-TensorCore VMEM


def _choose_pixel_tiling(howo, kc, cout):
    """Pick the pixel-tile Pt (lane dim) and padded pixel count HWp."""
    cap = _vmem_capacity()
    budget = int(cap * 0.45)

    def step_bytes(pt):
        per = (_blk_bytes(kc, pt, 2)          # x9 tile  (bf16)
               + _blk_bytes(1, pt, 4)         # per-pixel scale (f32)
               + _blk_bytes(cout, pt, 2)      # h_pre tile (bf16)
               + _blk_bytes(cout, LANE, 4))   # per-tile BN stats
        resident = _blk_bytes(cout, kc, 2) + _blk_bytes(cout, 1, 4)   # weights + bias
        return 2 * per + 2 * resident         # double-buffered

    small_pt = _round_up(howo, SUBLANE)
    if howo <= 1024 and step_bytes(small_pt) <= budget:
        return small_pt, small_pt, step_bytes(small_pt), cap

    pt = 2048
    while pt > LANE and step_bytes(pt) > budget:
        pt -= LANE
    if howo % LANE == 0:                      # avoid a tail-slice copy when possible
        while howo % pt:
            pt -= LANE
    return pt, _round_up(howo, pt), step_bytes(pt), cap


# --------------- Pass 1: partial-conv + per-tile BN partial sums -------------------

def _pconv_stats_kernel(x_ref, s_ref, w_ref, b_ref, h_ref, stats_ref):
    # x_ref: (1, KC, Pt) bf16   s_ref: (1, 1, Pt) f32
    # w_ref: (Cout, KC) bf16    b_ref: (Cout, 1) f32
    raw = jnp.dot(w_ref[...], x_ref[0], preferred_element_type=jnp.float32)   # (Cout, Pt)

    s = s_ref[0]                                                # (1, Pt), 0 where no valid pixel
    h = jnp.where(s > 0.0, raw * s + b_ref[...], 0.0)           # (Cout, Pt) f32

    h_ref[...] = h[None].astype(h_ref.dtype)                    # bf16 intermediate

    # Per-tile BN partial sums from the f32 value (padded pixels have s == 0 -> h == 0).
    csum = jnp.sum(h, axis=1, keepdims=True)                    # (Cout, 1)
    csq = jnp.sum(h * h, axis=1, keepdims=True)                 # (Cout, 1)
    lane = jax.lax.broadcasted_iota(jnp.int32, stats_ref.shape[2:], 1)   # (Cout, 128)
    stats = jnp.where(lane == 0, csum, 0.0) + jnp.where(lane == 1, csq, 0.0)
    stats_ref[...] = stats[None, None]                          # (1, 1, Cout, 128)


# --------------- Pass 2: folded BatchNorm (scale/shift) + ReLU ---------------------

def _bn_relu_kernel(h_ref, scale_ref, shift_ref, o_ref):
    h = h_ref[0].astype(jnp.float32)                            # (Cout, Pt)
    o_ref[...] = jnp.maximum(h * scale_ref[...] + shift_ref[...], 0.0)[None]


# --------------- Wrapper ------------------------------------------------------------

def partial_downsample_unit(x_nchw, neg_mask_nchw, weight, bias, gamma, beta):
    """Forward pass of Partial_downsample_unit.

    x_nchw:        (N, Cin, H, W) float32
    neg_mask_nchw: (N, 1,   H, W) float32 (binary)
    weight:        (Cout, Cin, 3, 3);  bias/gamma/beta: (Cout,)
    returns (h, h_mask) NCHW: (N, Cout, Ho, Wo), (N, 1, Ho, Wo)
    """
    N, Cin, H, W = x_nchw.shape
    Cout = weight.shape[0]
    Ho = (H + 2 * P - K) // S + 1
    Wo = (W + 2 * P - K) // S + 1
    HoWo = Ho * Wo
    KC = K * K * Cin

    # 1-channel mask statistics (tiny reduce_windows, stay in XLA):
    #   sum == mask_conv_0 (all-ones conv, zero pad), max == MaxPool2d (-inf pad).
    m = neg_mask_nchw.astype(jnp.float32)
    win, strd = (1, 1, K, K), (1, 1, S, S)
    pad4 = [(0, 0), (0, 0), (P, P), (P, P)]
    msum = jax.lax.reduce_window(m, 0.0, jax.lax.add, win, strd, pad4)       # (N,1,Ho,Wo)
    mmax = jax.lax.reduce_window(m, -jnp.inf, jax.lax.max, win, strd, pad4)  # (N,1,Ho,Wo)
    valid = msum > 0.0
    srow = jnp.where(valid, mmax * float(K * K) / jnp.where(valid, msum, 1.0), 0.0)

    # Pixel tiling (lane dim).
    Pt, HWp, step_bytes1, vmem_cap = _choose_pixel_tiling(HoWo, KC, Cout)
    T = HWp // Pt

    # Conv input: 9 tap-phase slices of the padded masked input, channel-concatenated,
    # flattened over pixels, bf16.  (N, 9*Cin, HWp)
    xm = (x_nchw * neg_mask_nchw).astype(jnp.bfloat16)
    xpad = jnp.pad(xm, ((0, 0), (0, 0), (P, P), (P, P)))
    taps = [xpad[:, :, kh:kh + S * Ho - 1:S, kw:kw + S * Wo - 1:S]
            for kh in range(K) for kw in range(K)]
    x9 = jnp.concatenate(taps, axis=1).reshape(N, KC, HoWo)
    if HWp != HoWo:
        x9 = jnp.pad(x9, ((0, 0), (0, 0), (0, HWp - HoWo)))

    s_flat = srow.reshape(N, 1, HoWo).astype(jnp.float32)       # padded pixels get s == 0
    if HWp != HoWo:
        s_flat = jnp.pad(s_flat, ((0, 0), (0, 0), (0, HWp - HoWo)))

    # (Cout, Cin, kh, kw) -> (Cout, kh, kw, Cin) -> (Cout, 9*Cin); matches tap ordering.
    w2 = jnp.transpose(weight, (0, 2, 3, 1)).reshape(Cout, KC).astype(jnp.bfloat16)
    b2 = bias.reshape(Cout, 1).astype(jnp.float32)

    # ---- pass 1: partial conv + BN partial sums (both grid axes parallel) ----------
    vmem1 = min(int(vmem_cap * 0.9), step_bytes1 + (8 << 20))
    h_pre, stats = pl.pallas_call(
        _pconv_stats_kernel,
        out_shape=(jax.ShapeDtypeStruct((N, Cout, HWp), jnp.bfloat16),
                   jax.ShapeDtypeStruct((N, T, Cout, LANE), jnp.float32)),
        grid=(N, T),
        in_specs=[
            pl.BlockSpec((1, KC, Pt), lambda n, t: (n, 0, t)),     # tap-phase input tile
            pl.BlockSpec((1, 1, Pt), lambda n, t: (n, 0, t)),      # per-pixel scale
            pl.BlockSpec((Cout, KC), lambda n, t: (0, 0)),         # weights (resident)
            pl.BlockSpec((Cout, 1), lambda n, t: (0, 0)),          # bias (resident)
        ],
        out_specs=(
            pl.BlockSpec((1, Cout, Pt), lambda n, t: (n, 0, t)),        # bf16 pre-BN act
            pl.BlockSpec((1, 1, Cout, LANE), lambda n, t: (n, t, 0, 0)),  # per-tile stats
        ),
        compiler_params=pltpu.CompilerParams(
            dimension_semantics=("parallel", "parallel"),
            vmem_limit_bytes=int(vmem1)),
    )(x9, s_flat, w2, b2)

    # ---- fold BN affine (tiny per-channel math on the partial sums) -----------------
    csum = stats[..., 0].sum(axis=(0, 1))                       # (Cout,)
    csq = stats[..., 1].sum(axis=(0, 1))                        # (Cout,)
    cnt = float(N * HoWo)
    mean = csum / cnt
    var = jnp.maximum(csq / cnt - mean * mean, 0.0)             # biased var, clamp >= 0
    bn_scale = (gamma.astype(jnp.float32) * jax.lax.rsqrt(var + BN_EPS)).reshape(Cout, 1)
    bn_shift = beta.astype(jnp.float32).reshape(Cout, 1) - mean.reshape(Cout, 1) * bn_scale

    # ---- pass 2: normalize + ReLU (lane-dense, parallel) ----------------------------
    vmem2 = min(int(vmem_cap * 0.9),
                2 * (_blk_bytes(Cout, Pt, 2) + _blk_bytes(Cout, Pt, 4))
                + 4 * _blk_bytes(Cout, 1, 4) + (8 << 20))
    out = pl.pallas_call(
        _bn_relu_kernel,
        out_shape=jax.ShapeDtypeStruct((N, Cout, HWp), jnp.float32),
        grid=(N, T),
        in_specs=[
            pl.BlockSpec((1, Cout, Pt), lambda n, t: (n, 0, t)),
            pl.BlockSpec((Cout, 1), lambda n, t: (0, 0)),
            pl.BlockSpec((Cout, 1), lambda n, t: (0, 0)),
        ],
        out_specs=pl.BlockSpec((1, Cout, Pt), lambda n, t: (n, 0, t)),
        compiler_params=pltpu.CompilerParams(
            dimension_semantics=("parallel", "parallel"),
            vmem_limit_bytes=int(vmem2)),
    )(h_pre, bn_scale, bn_shift)

    # Output is already channel-major: just drop pixel padding and reshape (no transpose).
    h = out[:, :, :HoWo].reshape(N, Cout, Ho, Wo)
    h_mask = mmax                                               # (N, 1, Ho, Wo)
    return h, h_mask


if __name__ == "__main__":
    key = jax.random.PRNGKey(0)
    k_x, k_m, k_w = jax.random.split(key, 3)

    N, Cin, Cout, Hs, Ws = 2, 4, 8, 16, 16

    x = jax.random.normal(k_x, (N, Cin, Hs, Ws), dtype=jnp.float32)
    neg_mask = jax.random.bernoulli(k_m, 0.6, (N, 1, Hs, Ws)).astype(jnp.float32)

    # Deterministic params mirroring the PyTorch module's __init__:
    # Conv2d weight: kaiming_normal_(fan_in) ~ N(0, sqrt(2/fan_in)); bias = 0
    fan_in = Cin * K * K
    weight = jax.random.normal(k_w, (Cout, Cin, K, K), dtype=jnp.float32) * jnp.sqrt(2.0 / fan_in)
    bias = jnp.zeros((Cout,), dtype=jnp.float32)
    # BatchNorm2d defaults: weight=1, bias=0 (training-mode batch statistics in forward)
    gamma = jnp.ones((Cout,), dtype=jnp.float32)
    beta = jnp.zeros((Cout,), dtype=jnp.float32)

    h, h_mask = partial_downsample_unit(x, neg_mask, weight, bias, gamma, beta)
    jax.block_until_ready((h, h_mask))

    assert h.shape == (N, Cout, Hs // 2, Ws // 2)
    assert h_mask.shape == (N, 1, Hs // 2, Ws // 2)
    print("KERNEL_OK")
</pallas_src>

<mosaic_0001>
module attributes {stable_mosaic.version = 11 : i64} {
  func.func @_pconv_stats_kernel(%arg0: i32, %arg1: i32, %arg2: memref<1x36x64xbf16, #tpu.memory_space<vmem>>, %arg3: memref<1x1x64xf32, #tpu.memory_space<vmem>>, %arg4: memref<8x36xbf16, #tpu.memory_space<vmem>>, %arg5: memref<8x1xf32, #tpu.memory_space<vmem>>, %arg6: memref<1x8x64xbf16, #tpu.memory_space<vmem>>, %arg7: memref<1x1x8x128xf32, #tpu.memory_space<vmem>>) attributes {dimension_semantics = [#tpu.dimension_semantics<parallel>, #tpu.dimension_semantics<parallel>], iteration_bounds = array<i64: 2, 1>, scalar_prefetch = 0 : i64, scratch_operands = 0 : i64, tpu.core_type = #tpu.core_type<tc>, window_params = [{transform_indices = @transform_0, window_bounds = array<i64: 1, 36, 64>}, {transform_indices = @transform_1, window_bounds = array<i64: 1, 1, 64>}, {pipeline_mode = #tpu.pipeline_mode<synchronous>, transform_indices = @transform_2, window_bounds = array<i64: 8, 36>}, {pipeline_mode = #tpu.pipeline_mode<synchronous>, transform_indices = @transform_3, window_bounds = array<i64: 8, 1>}, {transform_indices = @transform_4, window_bounds = array<i64: 1, 8, 64>}, {transform_indices = @transform_5, window_bounds = array<i64: 1, 1, 8, 128>}]} {
    %c0 = arith.constant 0 : index
    %c0_0 = arith.constant 0 : index
    %0 = vector.load %arg4[%c0, %c0_0] : memref<8x36xbf16, #tpu.memory_space<vmem>>, vector<8x36xbf16>
    %c0_1 = arith.constant 0 : index
    %c0_2 = arith.constant 0 : index
    %c0_3 = arith.constant 0 : index
    %1 = vector.load %arg2[%c0_1, %c0_2, %c0_3] : memref<1x36x64xbf16, #tpu.memory_space<vmem>>, vector<1x36x64xbf16>
    %2 = vector.shape_cast %1 : vector<1x36x64xbf16> to vector<36x64xbf16>
    %cst = arith.constant dense<0.000000e+00> : vector<8x64xf32>
    %3 = tpu.matmul %0, %2, %cst {dimension_numbers = #tpu.dot_dimension_numbers<[1], [0], [0], [1], [0, 0, 1, 1], [], []>} : vector<8x36xbf16>, vector<36x64xbf16>, vector<8x64xf32> -> vector<8x64xf32>
    %c0_4 = arith.constant 0 : index
    %c0_5 = arith.constant 0 : index
    %c0_6 = arith.constant 0 : index
    %4 = vector.load %arg3[%c0_4, %c0_5, %c0_6] : memref<1x1x64xf32, #tpu.memory_space<vmem>>, vector<1x1x64xf32>
    %5 = vector.shape_cast %4 : vector<1x1x64xf32> to vector<1x64xf32>
    %cst_7 = arith.constant 0.000000e+00 : f32
    %6 = vector.broadcast %cst_7 : f32 to vector<1x64xf32>
    %7 = arith.cmpf ogt, %5, %6 : vector<1x64xf32>
    %8 = vector.broadcast %5 : vector<1x64xf32> to vector<8x64xf32>
    %9 = arith.mulf %3, %8 : vector<8x64xf32>
    %c0_8 = arith.constant 0 : index
    %c0_9 = arith.constant 0 : index
    %10 = vector.load %arg5[%c0_8, %c0_9] : memref<8x1xf32, #tpu.memory_space<vmem>>, vector<8x1xf32>
    %11 = vector.broadcast %10 : vector<8x1xf32> to vector<8x64xf32>
    %12 = arith.addf %9, %11 : vector<8x64xf32>
    %cst_10 = arith.constant 0.000000e+00 : f32
    %13 = vector.shape_cast %7 : vector<1x64xi1> to vector<1x64xi1>
    %14 = vector.broadcast %13 : vector<1x64xi1> to vector<8x64xi1>
    %15 = vector.broadcast %cst_10 : f32 to vector<8x64xf32>
    %16 = arith.select %14, %12, %15 : vector<8x64xi1>, vector<8x64xf32>
    %17 = vector.shape_cast %16 : vector<8x64xf32> to vector<1x8x64xf32>
    %18 = arith.truncf %17 : vector<1x8x64xf32> to vector<1x8x64xbf16>
    %c0_11 = arith.constant 0 : index
    %c0_12 = arith.constant 0 : index
    %c0_13 = arith.constant 0 : index
    %19 = vector.load %arg6[%c0_11, %c0_12, %c0_13] : memref<1x8x64xbf16, #tpu.memory_space<vmem>>, vector<1x8x64xbf16>
    tpu.vector_store %arg6[%c0_11, %c0_12, %c0_13], %18 {strides = array<i32>} : memref<1x8x64xbf16, #tpu.memory_space<vmem>>, vector<1x8x64xbf16>,
    %cst_14 = arith.constant dense<0.000000e+00> : vector<8xf32>
    %20 = vector.multi_reduction <add>, %16, %cst_14 [1] : vector<8x64xf32> to vector<8xf32>
    %21 = vector.shape_cast %20 : vector<8xf32> to vector<8x1xf32>
    %22 = arith.mulf %16, %16 : vector<8x64xf32>
    %cst_15 = arith.constant dense<0.000000e+00> : vector<8xf32>
    %23 = vector.multi_reduction <add>, %22, %cst_15 [1] : vector<8x64xf32> to vector<8xf32>
    %24 = vector.shape_cast %23 : vector<8xf32> to vector<8x1xf32>
    %25 = tpu.iota {dimensions = array<i32: 1>} : vector<8x128xi32>
    %c0_i32 = arith.constant 0 : i32
    %26 = vector.broadcast %c0_i32 : i32 to vector<8x128xi32>
    %27 = arith.cmpi eq, %25, %26 : vector<8x128xi32>
    %cst_16 = arith.constant 0.000000e+00 : f32
    %28 = vector.shape_cast %21 : vector<8x1xf32> to vector<8x1xf32>
    %29 = vector.broadcast %28 : vector<8x1xf32> to vector<8x128xf32>
    %30 = vector.broadcast %cst_16 : f32 to vector<8x128xf32>
    %31 = arith.select %27, %29, %30 : vector<8x128xi1>, vector<8x128xf32>
    %c1_i32 = arith.constant 1 : i32
    %32 = vector.broadcast %c1_i32 : i32 to vector<8x128xi32>
    %33 = arith.cmpi eq, %25, %32 : vector<8x128xi32>
    %cst_17 = arith.constant 0.000000e+00 : f32
    %34 = vector.shape_cast %24 : vector<8x1xf32> to vector<8x1xf32>
    %35 = vector.broadcast %34 : vector<8x1xf32> to vector<8x128xf32>
    %36 = vector.broadcast %cst_17 : f32 to vector<8x128xf32>
    %37 = arith.select %33, %35, %36 : vector<8x128xi1>, vector<8x128xf32>
    %38 = arith.addf %31, %37 : vector<8x128xf32>
    %39 = vector.shape_cast %38 : vector<8x128xf32> to vector<1x1x8x128xf32>
    %c0_18 = arith.constant 0 : index
    %c0_19 = arith.constant 0 : index
    %c0_20 = arith.constant 0 : index
    %c0_21 = arith.constant 0 : index
    %40 = vector.load %arg7[%c0_18, %c0_19, %c0_20, %c0_21] : memref<1x1x8x128xf32, #tpu.memory_space<vmem>>, vector<1x1x8x128xf32>
    tpu.vector_store %arg7[%c0_18, %c0_19, %c0_20, %c0_21], %39 {strides = array<i32>} : memref<1x1x8x128xf32, #tpu.memory_space<vmem>>, vector<1x1x8x128xf32>,
    return
  }
  func.func @transform_0(%arg0: i32, %arg1: i32) -> (i32, i32, i32) {
    %c0_i32 = arith.constant 0 : i32
    %c0_i32_0 = arith.constant 0 : i32
    return %arg0, %c0_i32, %arg1 : i32, i32, i32
  }
  func.func @transform_1(%arg0: i32, %arg1: i32) -> (i32, i32, i32) {
    %c0_i32 = arith.constant 0 : i32
    %c0_i32_0 = arith.constant 0 : i32
    return %arg0, %c0_i32, %arg1 : i32, i32, i32
  }
  func.func @transform_2(%arg0: i32, %arg1: i32) -> (i32, i32) {
    %c0_i32 = arith.constant 0 : i32
    %c0_i32_0 = arith.constant 0 : i32
    %c0_i32_1 = arith.constant 0 : i32
    return %c0_i32, %c0_i32_0 : i32, i32
  }
  func.func @transform_3(%arg0: i32, %arg1: i32) -> (i32, i32) {
    %c0_i32 = arith.constant 0 : i32
    %c0_i32_0 = arith.constant 0 : i32
    %c0_i32_1 = arith.constant 0 : i32
    return %c0_i32, %c0_i32_0 : i32, i32
  }
  func.func @transform_4(%arg0: i32, %arg1: i32) -> (i32, i32, i32) {
    %c0_i32 = arith.constant 0 : i32
    %c0_i32_0 = arith.constant 0 : i32
    return %arg0, %c0_i32, %arg1 : i32, i32, i32
  }
  func.func @transform_5(%arg0: i32, %arg1: i32) -> (i32, i32, i32, i32) {
    %c0_i32 = arith.constant 0 : i32
    %c0_i32_0 = arith.constant 0 : i32
    %c0_i32_1 = arith.constant 0 : i32
    return %arg0, %arg1, %c0_i32, %c0_i32_0 : i32, i32, i32, i32
  }
}

</mosaic_0001>

<llo_original>
// kernel: tpu_custom_call.1
$region0: #{tpu_custom_call.1}
  #allocation0 [shape = 'u32[]', space=smem, size = 0x4, offset = 0x4, fixed_abs, tag = 'smem constant byte address 0x4 - core index']
  #allocation1 [shape = 'u32[72,128]{1,0:T(1,128)}', space=vmem, size = 0x9000, scoped, tag = 'internal scratch']
  %s0 = inlined_call_operand.vmem [shape: bf16[2,36,64], index: 0, kind: input, shape index: {}]
  %s1 = inlined_call_operand.vmem [shape: f32[2,1,64], index: 1, kind: input, shape index: {}]
  %s2 = inlined_call_operand.vmem [shape: bf16[8,36], index: 2, kind: input, shape index: {}]
  %s3 = inlined_call_operand.vmem [shape: f32[8,1], index: 3, kind: input, shape index: {}]
  %s4 = inlined_call_operand.hbm [shape: bf16[2,8,64], index: 4, kind: output, shape index: {0}]
  %s5 = inlined_call_operand.hbm [shape: f32[2,1,8,128], index: 5, kind: output, shape index: {1}]
  %6 = xla_tuple %s4, %s5
  %s7 = sld [smem:[#allocation0]]
  $region57: #{tpu_custom_call.1} parent=0
    _
  %s9 = ssub.s32 1, %s7
  %s10 = scalar_select 0, %s9, %s7
  $region1: #{tpu_custom_call.1} parent=0
    #allocation2 [shape = 'u8[4096]{0}', space=vmem, size = 0x1000, scoped, tag = 'output window, operand 0']
    #allocation3 [shape = 's32[2]{0}', space=sflag, size = 0x8, scoped, tag = 'scoped memory for tpu_custom_call.1']
    #allocation4 [shape = 'u8[8192]{0}', space=vmem, size = 0x2000, scoped, tag = 'output window, operand 1']
    #allocation5 [shape = 's32[2]{0}', space=sflag, size = 0x8, scoped, tag = 'scoped memory for tpu_custom_call.1']
    %11 = vsyncpa [#allocation3], 0
    %s12 = scalar_lea.sflag [#allocation3], 1
    %13 = vsyncpa %s12, 0
    %14 = vsyncpa [#allocation5], 0
    %s15 = scalar_lea.sflag [#allocation5], 1
    %16 = vsyncpa %s15, 0
    loop: start=0, step=1, limit=4
    $region2: #{tpu_custom_call.1} parent=1 // loop_pre_header
      _
    $region3: #{tpu_custom_call.1} parent=1 // loop_header
      %s18 = sphi 0, %s22
      %p19 = scmp.ge.s32.totalorder %s18, 4
      %s25 = sphi 0, %s37
      %s26 = sphi 0, %s33
      %s27 = sphi 0, %s25
      %s28 = sphi 0, %s26
      %s29 = sphi 0, %s27
      %s30 = sphi 0, %s28
      %s42 = sphi 0, %s44
      %s45 = sphi 0, %s42
      %s46 = sphi 0, %s45
      %s62 = sphi 0, %s46
      %s70 = sphi 0, %s72
      %s73 = sphi 0, %s70
      %s74 = sphi 0, %s73
      %s90 = sphi 0, %s74
      %s94 = sphi 0, %s94
      %s96 = sphi 0, %s94
      %s97 = sphi 0, %s96
      %s111 = sphi 0, %s97
      %s115 = sphi 0, %s115
      %s117 = sphi 0, %s115
      %s118 = sphi 0, %s117
      %s132 = sphi 0, %s118
      %s140 = sphi 0, %s142
      %s143 = sphi 0, %s140
      %s144 = sphi 0, %s143
      %s160 = sphi 0, %s144
      %s168 = sphi 0, %s170
      %s171 = sphi 0, %s168
      %s172 = sphi 0, %s171
      %s188 = sphi 0, %s172
    $region4: #{tpu_custom_call.1} parent=1 // loop_header_branch
      %21 = sbr.rel (%p19) target = $region8
    $region5: #{tpu_custom_call.1} parent=1 // loop_body
      %s23 = ssub.s32 %s18, 1
      %s24 = ssub.s32 %s18, 2
      %s31 = sadd.s32 1, %s26
      %p32 = scmp.ge.s32.totalorder %s31, 1
      %s33 = scalar_select %p32, 0, %s31
      %s34 = sadd.s32 1, %s25
      %s35 = scalar_select %p32, %s34, %s25
      %p36 = scmp.ge.s32.totalorder %s35, 2
      %s37 = scalar_select %p36, 0, %s35
      %s38 = ssub.s32 %s25, %s37
      %s39 = ssub.s32 %s26, %s33
      %s40 = sor.u32 %s38, %s39
      %p41 = scmp.eq.s32.totalorder %s40, 0
      %s43 = sadd.s32 %s42, 1
      %s44 = scalar_select %p41, %s42, %s43
      %p47 = pneg %p41
      %p48 = scmp.eq.s32.totalorder %s18, 1
      %p49 = por %p47, %p48
      %p50 = scmp.ne.s32.totalorder %s42, %s45
      %p51 = scmp.eq.s32.totalorder %s18, 0
      %p52 = por %p50, %p51
      %p53 = scmp.ne.s32.totalorder %s42, %s45
      %p54 = scmp.eq.s32.totalorder %s23, 1
      %p55 = por %p53, %p54
      %p56 = scmp.ne.s32.totalorder %s45, %s46
      %p57 = scmp.eq.s32.totalorder %s23, 0
      %p58 = por %p56, %p57
      %p59 = scmp.ne.s32.totalorder %s45, %s46
      %p60 = scmp.eq.s32.totalorder %s24, 1
      %p61 = por %p59, %p60
      %p63 = scmp.ne.s32.totalorder %s46, %s62
      %p64 = scmp.eq.s32.totalorder %s24, 0
      %p65 = por %p63, %p64
      %s66 = ssub.s32 %s25, %s37
      %s67 = ssub.s32 %s26, %s33
      %s68 = sor.u32 %s66, %s67
      %p69 = scmp.eq.s32.totalorder %s68, 0
      %s71 = sadd.s32 %s70, 1
      %s72 = scalar_select %p69, %s70, %s71
      %p75 = pneg %p69
      %p76 = scmp.eq.s32.totalorder %s18, 1
      %p77 = por %p75, %p76
      %p78 = scmp.ne.s32.totalorder %s70, %s73
      %p79 = scmp.eq.s32.totalorder %s18, 0
      %p80 = por %p78, %p79
      %p81 = scmp.ne.s32.totalorder %s70, %s73
      %p82 = scmp.eq.s32.totalorder %s23, 1
      %p83 = por %p81, %p82
      %p84 = scmp.ne.s32.totalorder %s73, %s74
      %p85 = scmp.eq.s32.totalorder %s23, 0
      %p86 = por %p84, %p85
      %p87 = scmp.ne.s32.totalorder %s73, %s74
      %p88 = scmp.eq.s32.totalorder %s24, 1
      %p89 = por %p87, %p88
      %p91 = scmp.ne.s32.totalorder %s74, %s90
      %p92 = scmp.eq.s32.totalorder %s24, 0
      %p93 = por %p91, %p92
      %s95 = sadd.s32 %s94, 1
      %p98 = scmp.eq.s32.totalorder %s18, 1
      %p99 = scmp.ne.s32.totalorder %s94, %s96
      %p100 = scmp.eq.s32.totalorder %s18, 0
      %p101 = por %p99, %p100
      %p102 = scmp.ne.s32.totalorder %s94, %s96
      %p103 = scmp.eq.s32.totalorder %s23, 1
      %p104 = por %p102, %p103
      %p105 = scmp.ne.s32.totalorder %s96, %s97
      %p106 = scmp.eq.s32.totalorder %s23, 0
      %p107 = por %p105, %p106
      %p108 = scmp.ne.s32.totalorder %s96, %s97
      %p109 = scmp.eq.s32.totalorder %s24, 1
      %p110 = por %p108, %p109
      %p112 = scmp.ne.s32.totalorder %s97, %s111
      %p113 = scmp.eq.s32.totalorder %s24, 0
      %p114 = por %p112, %p113
      %s116 = sadd.s32 %s115, 1
      %p119 = scmp.eq.s32.totalorder %s18, 1
      %p120 = scmp.ne.s32.totalorder %s115, %s117
      %p121 = scmp.eq.s32.totalorder %s18, 0
      %p122 = por %p120, %p121
      %p123 = scmp.ne.s32.totalorder %s115, %s117
      %p124 = scmp.eq.s32.totalorder %s23, 1
      %p125 = por %p123, %p124
      %p126 = scmp.ne.s32.totalorder %s117, %s118
      %p127 = scmp.eq.s32.totalorder %s23, 0
      %p128 = por %p126, %p127
      %p129 = scmp.ne.s32.totalorder %s117, %s118
      %p130 = scmp.eq.s32.totalorder %s24, 1
      %p131 = por %p129, %p130
      %p133 = scmp.ne.s32.totalorder %s118, %s132
      %p134 = scmp.eq.s32.totalorder %s24, 0
      %p135 = por %p133, %p134
      %s136 = ssub.s32 %s25, %s37
      %s137 = ssub.s32 %s26, %s33
      %s138 = sor.u32 %s136, %s137
      %p139 = scmp.eq.s32.totalorder %s138, 0
      %s141 = sadd.s32 %s140, 1
      %s142 = scalar_select %p139, %s140, %s141
      %p145 = pneg %p139
      %p146 = scmp.eq.s32.totalorder %s18, 1
      %p147 = por %p145, %p146
      %p148 = scmp.ne.s32.totalorder %s140, %s143
      %p149 = scmp.eq.s32.totalorder %s18, 0
      %p150 = por %p148, %p149
      %p151 = scmp.ne.s32.totalorder %s140, %s143
      %p152 = scmp.eq.s32.totalorder %s23, 1
      %p153 = por %p151, %p152
      %p154 = scmp.ne.s32.totalorder %s143, %s144
      %p155 = scmp.eq.s32.totalorder %s23, 0
      %p156 = por %p154, %p155
      %p157 = scmp.ne.s32.totalorder %s143, %s144
      %p158 = scmp.eq.s32.totalorder %s24, 1
      %p159 = por %p157, %p158
      %p161 = scmp.ne.s32.totalorder %s144, %s160
      %p162 = scmp.eq.s32.totalorder %s24, 0
      %p163 = por %p161, %p162
      %s164 = ssub.s32 %s25, %s37
      %s165 = ssub.s32 %s26, %s33
      %s166 = sor.u32 %s164, %s165
      %p167 = scmp.eq.s32.totalorder %s166, 0
      %s169 = sadd.s32 %s168, 1
      %s170 = scalar_select %p167, %s168, %s169
      %p173 = pneg %p167
      %p174 = scmp.eq.s32.totalorder %s18, 1
      %p175 = por %p173, %p174
      %p176 = scmp.ne.s32.totalorder %s168, %s171
      %p177 = scmp.eq.s32.totalorder %s18, 0
      %p178 = por %p176, %p177
      %p179 = scmp.ne.s32.totalorder %s168, %s171
      %p180 = scmp.eq.s32.totalorder %s23, 1
      %p181 = por %p179, %p180
      %p182 = scmp.ne.s32.totalorder %s171, %s172
      %p183 = scmp.eq.s32.totalorder %s23, 0
      %p184 = por %p182, %p183
      %p185 = scmp.ne.s32.totalorder %s171, %s172
      %p186 = scmp.eq.s32.totalorder %s24, 1
      %p187 = por %p185, %p186
      %p189 = scmp.ne.s32.totalorder %s172, %s188
      %p190 = scmp.eq.s32.totalorder %s24, 0
      %p191 = por %p189, %p190
      %p192 = scmp.le.s32.totalorder 1, %s18
      %p193 = scmp.lt.s32.totalorder %s18, 3
      %p194 = pnand %p192, %p193
      %p195 = pneg %p194
      // Predicated region
      $region9: #{tpu_custom_call.1} parent=5 // pred_check
        _
      $region10: #{tpu_custom_call.1} parent=5 // pred_check_branch
        %197 = sbr.rel (%p194) target = $region12
      $region11: #{tpu_custom_call.1} parent=5 // pred_region
        %s198 = ssub.s32 %s18, 1
        // Predicated region
        $region13: #{tpu_custom_call.1} parent=11 // pred_check
          %p199 = pneg %p107
        $region14: #{tpu_custom_call.1} parent=11 // pred_check_branch
          %201 = sbr.rel (%p199) target = $region16
        $region15: #{tpu_custom_call.1} parent=11 // pred_region
          _
        $region16: #{tpu_custom_call.1} parent=11 // pred_fallthru
          _
        // Predicated region
        $region17: #{tpu_custom_call.1} parent=11 // pred_check
          %p202 = pneg %p128
        $region18: #{tpu_custom_call.1} parent=11 // pred_check_branch
          %204 = sbr.rel (%p202) target = $region20
        $region19: #{tpu_custom_call.1} parent=11 // pred_region
          _
        $region20: #{tpu_custom_call.1} parent=11 // pred_fallthru
          _
      $region12: #{tpu_custom_call.1} parent=5 // pred_fallthru
        _
      %p205 = scmp.lt.s32.totalorder %s18, 2
      // Predicated region
      $region21: #{tpu_custom_call.1} parent=5 // pred_check
        %p206 = pneg %p205
      $region22: #{tpu_custom_call.1} parent=5 // pred_check_branch
        %208 = sbr.rel (%p206) target = $region24
      $region23: #{tpu_custom_call.1} parent=5 // pred_region
        // Predicated region
        $region25: #{tpu_custom_call.1} parent=23 // pred_check
          %p209 = pneg %p52
        $region26: #{tpu_custom_call.1} parent=23 // pred_check_branch
          %211 = sbr.rel (%p209) target = $region28
        $region27: #{tpu_custom_call.1} parent=23 // pred_region
          %p212 = scmp.lt.s32.totalorder %s25, 1
          %s213 = scalar_select %p212, %s25, 1
          %p214 = scmp.lt.s32.totalorder %s26, 0
          %s215 = scalar_select %p214, %s26, 0
          %s216 = smul.addr %s213, 5
          %s217 = sadd.s32 %s215, %s216
          %s218 = smul.addr %s217, 4
          %s219 = scalar_lea.vmem %s0, %s218
        $region28: #{tpu_custom_call.1} parent=23 // pred_fallthru
          _
        // Predicated region
        $region29: #{tpu_custom_call.1} parent=23 // pred_check
          %p220 = pneg %p80
        $region30: #{tpu_custom_call.1} parent=23 // pred_check_branch
          %222 = sbr.rel (%p220) target = $region32
        $region31: #{tpu_custom_call.1} parent=23 // pred_region
          %p223 = scmp.lt.s32.totalorder %s25, 1
          %s224 = scalar_select %p223, %s25, 1
          %p225 = scmp.lt.s32.totalorder %s26, 0
          %s226 = scalar_select %p225, %s26, 0
          %s227 = sadd.s32 %s226, %s224
          %s228 = scalar_lea.vmem %s1, %s227
        $region32: #{tpu_custom_call.1} parent=23 // pred_fallthru
          _
      $region24: #{tpu_custom_call.1} parent=5 // pred_fallthru
        _
      %p229 = scmp.le.s32.totalorder 1, %s18
      %p230 = scmp.lt.s32.totalorder %s18, 3
      %p231 = pnand %p229, %p230
      %p232 = pneg %p231
      // Predicated region
      $region33: #{tpu_custom_call.1} parent=5 // pred_check
        _
      $region34: #{tpu_custom_call.1} parent=5 // pred_check_branch
        %234 = sbr.rel (%p231) target = $region36
      $region35: #{tpu_custom_call.1} parent=5 // pred_region
        %s235 = ssub.s32 %s18, 1
        %p236 = scmp.lt.s32.totalorder %s27, 1
        %s237 = scalar_select %p236, %s27, 1
        %p238 = scmp.lt.s32.totalorder %s28, 0
        %s239 = scalar_select %p238, %s28, 0
        %s240 = smul.addr %s237, 5
        %s241 = sadd.s32 %s239, %s240
        %s242 = smul.addr %s241, 4
        %s243 = scalar_lea.vmem %s0, %s242
        %p244 = pneg %p58
        %p245 = pneg %p55
        %p246 = scmp.lt.s32.totalorder %s27, 1
        %s247 = scalar_select %p246, %s27, 1
        %p248 = scmp.lt.s32.totalorder %s28, 0
        %s249 = scalar_select %p248, %s28, 0
        %s250 = sadd.s32 %s249, %s247
        %s251 = scalar_lea.vmem %s1, %s250
        %p252 = pneg %p86
        %p253 = pneg %p83
        %p254 = pneg %p107
        %p255 = pneg %p104
        %p256 = pneg %p128
        %p257 = pneg %p125
        %p258 = pneg %p156
        %p259 = pneg %p153
        %s260 = sand.u32 %s143, 1
        %s261 = scalar_lea.sflag [#allocation3], %s260
        %s262 = sand.u32 %s143, 1
        %s263 = smul.addr %s262, 4
        %s264 = scalar_lea.vmem [#allocation2], %s263
        %p265 = pneg %p184
        %p266 = pneg %p181
        %s267 = sand.u32 %s171, 1
        %s268 = scalar_lea.sflag [#allocation5], %s267
        %s269 = sand.u32 %s171, 1
        %s270 = smul.addr %s269, 8
        %s271 = scalar_lea.vmem [#allocation4], %s270
        %p272 = scmp.lt.s32.totalorder %s27, 1
        %s273 = scalar_select %p272, %s27, 1
        %p274 = scmp.lt.s32.totalorder %s28, 0
        %s275 = scalar_select %p274, %s28, 0
        %s276 = smul.addr %s273, 5
        %s277 = sadd.s32 %s275, %s276
        %s278 = smul.addr %s277, 4
        %s279 = scalar_lea.vmem %s0, %s278
        %p280 = scmp.lt.s32.totalorder %s27, 1
        %s281 = scalar_select %p280, %s27, 1
        %p282 = scmp.lt.s32.totalorder %s28, 0
        %s283 = scalar_select %p282, %s28, 0
        %s284 = sadd.s32 %s283, %s281
        %s285 = scalar_lea.vmem %s1, %s284
        %v287 = vld [vmem:[%s2] sm:$0xf]
        %v288 = vld [vmem:[%s279] sm:$0xf]
        %v289 = vld [vmem:[%s279 + $0x4] sm:$0xf]
        %v290 = vld [vmem:[%s279 + $0x8] sm:$0xf]
        %v291 = vld [vmem:[%s279 + $0xc] sm:$0xf]
        %v292 = vld [vmem:[%s279 + $0x10] sm:$0x3]
        %v298 = vunpack.c.l.b16 %v288
        %v299 = vunpack.c.l.b16 %v289
        %v300 = vunpack.c.l.b16 %v290
        %v301 = vunpack.c.l.b16 %v291
        %v302 = vunpack.c.l.b16 %v292
        %v303 = vpack.c.b16 %v299, %v298
        %v304 = vpack.c.b16 %v301, %v300
        %v305 = vpack.c.b16 %v302, %v302
        %vm308 = vcmask 293888
        %v310 = vsel %vm308, %v287, 0
        %vm312 = vcmask 1041408
        %v314 = vsel %vm312, %v305, 0
        %316 = vmatpush.bf16.msra.mxu0 0
        %317 = vmatpush.bf16.msra.mxu0 0
        %318 = vmatpush.bf16.msra.mxu0 0
        %319 = vmatpush.bf16.msra.mxu0 0
        %320 = vmatpush.bf16.msra.mxu0 0
        %321 = vmatpush.bf16.msra.mxu0 %v314
        %322 = vmatpush.bf16.msra.mxu0 %v304
        %323 = vmatpush.bf16.msra.mxu0 %v303
        %324 = vmatmul.bf16.gmra.mxu0 %v310
        %v325 = vpop.f32.mrf.mxu0
        %v326 = vadd.f32 0.0, %v325
        %v327 = vpop.f32.mrf.mxu0
        %328 = vdwg.mxu0
        %v329 = vld [vmem:[%s285] sm:$0x1]
        %vm330 = vcmp.gt.f32.partialorder %v329, 0.0
        %v332 = vperm.slane %v329, 0
        %v334 = vmul.f32 %v326, %v332
        %v335 = vld [vmem:[%s3] sm:$0xff]
        %337 = vset.pattern.permute.xlu0 0
        %338 = vperm.xlu0 %337, %v335
        %v339 = vpop.permute.xlu0 %338
        %v341 = vadd.f32 %v334, %v339
        %v342 = vsel %vm330, 1, 0
        %v343 = vperm.slane %v342, 0
        %vm344 = vcmp.eq.s32.totalorder %v343, 1
        %v345 = vsel %vm344, %v341, 0.0
        %v346 = vpack.c.bf16 %v345, %v345
        %vm347 = vcmask 519168
        %348 = vst.msk [vmem:[%s264] sm:$0xf] %vm347, %v346
        %vm349 = vcmask 523264
        %v350 = vsel %vm349, %v345, 0.0
        %351 = vadd.xlane.f32.xlu0 %v350
        %v352 = vpop.xlane.xlu0 %351
        %v353 = vmul.f32 %v345, %v345
        %v354 = vsel %vm349, %v353, 0.0
        %355 = vadd.xlane.f32.xlu0 %v354
        %v356 = vpop.xlane.xlu0 %355
        %v357 = vlaneseq
        %v358 = vand.u32 %v357, 127
        %vm359 = vcmp.eq.s32.totalorder %v358, 0
        %v360 = vsel %vm359, %v352, 0.0
        %vm361 = vcmp.eq.s32.totalorder %v358, 1
        %v362 = vsel %vm361, %v356, 0.0
        %v363 = vadd.f32 %v360, %v362
        %364 = vst [vmem:[%s271] sm:$0xff] %v363
        %s365 = sand.u32 %s143, 1
        %s366 = scalar_lea.sflag [#allocation3], %s365
        %s367 = sand.u32 %s143, 1
        %s368 = smul.addr %s367, 4
        %s369 = scalar_lea.vmem [#allocation2], %s368
        %s370 = sand.u32 %s171, 1
        %s371 = scalar_lea.sflag [#allocation5], %s370
        %s372 = sand.u32 %s171, 1
        %s373 = smul.addr %s372, 8
        %s374 = scalar_lea.vmem [#allocation4], %s373
        // Predicated region
        $region37: #{tpu_custom_call.1} parent=35 // pred_check
          %p375 = pneg %p153
        $region38: #{tpu_custom_call.1} parent=35 // pred_check_branch
          %377 = sbr.rel (%p375) target = $region40
        $region39: #{tpu_custom_call.1} parent=35 // pred_region
          %379 = vsyncadd %s366, 0
          %s380 = sadd.s32 %s28, %s27
          %s381 = smul.addr %s380, 4
          %s382 = scalar_lea.hbm %s4, %s381
          %s384 = sshll.u32 %s369, 4
          %s385 = int_to_ptr.vmem [resolvable:$true] %s384
          %s386 = sshll.u32 %s382, 4
          %s387 = int_to_ptr.hbm [resolvable:$true] %s386
          %389 = dma.vmem_to_hbm [thread:$0]  %s385, 64, %s387, %s366
        $region40: #{tpu_custom_call.1} parent=35 // pred_fallthru
          _
        // Predicated region
        $region41: #{tpu_custom_call.1} parent=35 // pred_check
          %p390 = pneg %p181
        $region42: #{tpu_custom_call.1} parent=35 // pred_check_branch
          %392 = sbr.rel (%p390) target = $region44
        $region43: #{tpu_custom_call.1} parent=35 // pred_region
          %394 = vsyncadd %s371, 0
          %s395 = sadd.s32 %s28, %s27
          %s396 = smul.addr %s395, 8
          %s397 = scalar_lea.hbm %s5, %s396
          %s399 = sshll.u32 %s374, 4
          %s400 = int_to_ptr.vmem [resolvable:$true] %s399
          %s401 = sshll.u32 %s397, 4
          %s402 = int_to_ptr.hbm [resolvable:$true] %s401
          %404 = dma.vmem_to_hbm [thread:$0]  %s400, 128, %s402, %s371
        $region44: #{tpu_custom_call.1} parent=35 // pred_fallthru
          _
      $region36: #{tpu_custom_call.1} parent=5 // pred_fallthru
        _
      %p405 = scmp.le.s32.totalorder 2, %s18
      // Predicated region
      $region45: #{tpu_custom_call.1} parent=5 // pred_check
        %p406 = pneg %p405
      $region46: #{tpu_custom_call.1} parent=5 // pred_check_branch
        %408 = sbr.rel (%p406) target = $region48
      $region47: #{tpu_custom_call.1} parent=5 // pred_region
        %s409 = ssub.s32 %s18, 2
        // Predicated region
        $region49: #{tpu_custom_call.1} parent=47 // pred_check
          %p410 = pneg %p159
        $region50: #{tpu_custom_call.1} parent=47 // pred_check_branch
          %412 = sbr.rel (%p410) target = $region52
        $region51: #{tpu_custom_call.1} parent=47 // pred_region
          %s413 = sand.u32 %s144, 1
          %s414 = scalar_lea.sflag [#allocation3], %s413
          %s415 = sand.u32 %s144, 1
          %s416 = smul.addr %s415, 4
          %s417 = scalar_lea.vmem [#allocation2], %s416
          %419 = dma.done %s414, 64
        $region52: #{tpu_custom_call.1} parent=47 // pred_fallthru
          _
        // Predicated region
        $region53: #{tpu_custom_call.1} parent=47 // pred_check
          %p420 = pneg %p187
        $region54: #{tpu_custom_call.1} parent=47 // pred_check_branch
          %422 = sbr.rel (%p420) target = $region56
        $region55: #{tpu_custom_call.1} parent=47 // pred_region
          %s423 = sand.u32 %s172, 1
          %s424 = scalar_lea.sflag [#allocation5], %s423
          %s425 = sand.u32 %s172, 1
          %s426 = smul.addr %s425, 8
          %s427 = scalar_lea.vmem [#allocation4], %s426
          %429 = dma.done %s424, 128
        $region56: #{tpu_custom_call.1} parent=47 // pred_fallthru
          _
      $region48: #{tpu_custom_call.1} parent=5 // pred_fallthru
        _
    $region6: #{tpu_custom_call.1} parent=1 // loop_footer
      %s22 = sadd.s32 1, %s18
    $region7: #{tpu_custom_call.1} parent=1 // loop_footer_branch
      %17 = sbr.rel target = $region3
    $region8: #{tpu_custom_call.1} parent=1 // loop_exit
      _
    %430 = vsyncpa [#allocation3], 1
    %s431 = scalar_lea.sflag [#allocation3], 1
    %432 = vsyncpa %s431, 1
    %433 = vsyncpa [#allocation5], 1
    %s434 = scalar_lea.sflag [#allocation5], 1
    %435 = vsyncpa %s434, 1

</llo_original>
